<compile_context>
chip_gen: v6e
topology: v6e:2x2x1
jax: 0.10.0
libtpu: 0.0.40
codegen_flags: <defaults>
</compile_context>

<pallas_src>
import functools

import jax
import jax.numpy as jnp
from jax.experimental import pallas as pl
from jax.experimental.pallas import tpu as pltpu


# ---------------------------------------------------------------------------
# Kernel
# ---------------------------------------------------------------------------
def _dilated_circ_conv_kernel(x_ref, w_ref, b_ref, o_ref, *, n_adj, dilation,
                              use_roll, roll_sign):
    # x_ref: (Nb, C_in_p, L)    Nb batch elements (leading dim is untiled)
    # w_ref: (C_out, K*C_in_p)  tap-major flattened conv weight
    # b_ref: (C_out, 1)         conv bias, already f32
    # o_ref: (Nb, C_out, L)
    nb, _, L = x_ref.shape
    c_out = o_ref.shape[1]
    K = 2 * n_adj + 1
    pad = n_adj * dilation

    w = w_ref[...]
    # Hoisted bias broadcast (JAX does not CSE broadcast_in_dim inside loops).
    bias = jnp.broadcast_to(b_ref[...], (c_out, L))

    for b in range(nb):  # static unroll over the folded batch elements
        x_b = x_ref[b]                                            # (C_in_p, L)

        if pad == 0:
            xs = x_b
        elif use_roll:
            # Per-tap circular shift on the XLU; no padded buffer, no
            # unaligned lane slices.  Shifts are static Python ints.
            taps = [
                pltpu.roll(x_b, shift=(roll_sign * (pad - k * dilation)) % L,
                           axis=1)
                for k in range(K)
            ]
            xs = jnp.concatenate(taps, axis=0)                    # (K*C_in_p, L)
        else:
            # Fallback for L not lane-aligned: build the circular halo in VMEM.
            xpad = jnp.concatenate([x_b[:, L - pad:], x_b, x_b[:, :pad]], axis=1)
            taps = [xpad[:, k * dilation:k * dilation + L] for k in range(K)]
            xs = jnp.concatenate(taps, axis=0)                    # (K*C_in_p, L)

        # Single fused MXU matmul per batch element, f32 accumulation.
        acc = jnp.dot(w, xs, preferred_element_type=jnp.float32)  # (C_out, L)
        acc = acc + bias
        o_ref[b] = acc.astype(o_ref.dtype)


# ---------------------------------------------------------------------------
# pltpu.roll feature / direction probe (cached; one tiny kernel per dtype)
# ---------------------------------------------------------------------------
@functools.lru_cache(maxsize=None)
def _roll_sign(dtype_name):
    """Returns +1 if pltpu.roll matches jnp.roll (y[i] = x[(i - s) % L]),
    -1 if it rotates the other way, 0 if roll is unusable for this dtype."""
    try:
        dtype = jnp.dtype(dtype_name)

        def probe(x_ref, o_ref):
            o_ref[...] = pltpu.roll(x_ref[...], shift=1, axis=1)

        x = jnp.broadcast_to(jnp.arange(128, dtype=dtype), (16, 128))
        out = pl.pallas_call(
            probe, out_shape=jax.ShapeDtypeStruct((16, 128), dtype))(x)
        v = float(jax.block_until_ready(out)[0, 1])
        if v == 0.0:
            return 1
        if v == 2.0:
            return -1
        return 0
    except Exception:
        return 0


# ---------------------------------------------------------------------------
# Wrapper
# ---------------------------------------------------------------------------
def dilated_circ_conv(x, weight, bias, *, n_adj=4, dilation=1,
                      batch_block=8, compute_dtype=None):
    """x: (N, C_in, L), weight: (C_out, C_in, 2*n_adj+1), bias: (C_out,)
    -> (N, C_out, L).  Matches DilatedCircConv.forward (circular pad + Conv1d)."""
    N, C_in, L = x.shape
    C_out, C_in_w, K = weight.shape
    assert C_in_w == C_in and K == 2 * n_adj + 1
    # Same restriction as the PyTorch single-slice circular pad.
    assert n_adj * dilation <= L, "circular pad (n_adj*dilation) must not exceed L"

    out_dtype = x.dtype
    cdt = jnp.dtype(compute_dtype) if compute_dtype is not None else jnp.dtype(x.dtype)

    # Sublane-align C_in per tap: 8 rows for 4-byte dtypes, 16 for 2-byte.
    sub = max(8, 32 // cdt.itemsize)
    C_in_p = ((C_in + sub - 1) // sub) * sub

    xc = x.astype(cdt)
    wc = weight.astype(cdt)
    if C_in_p != C_in:
        xc = jnp.pad(xc, ((0, 0), (0, C_in_p - C_in), (0, 0)))
        wc = jnp.pad(wc, ((0, 0), (0, C_in_p - C_in), (0, 0)))

    # Tap-major flatten so it matches the in-kernel tap stacking:
    #   w2[o, k*C_in_p + c] == weight[o, c, k]
    w2 = jnp.transpose(wc, (0, 2, 1)).reshape(C_out, K * C_in_p)
    b2 = bias.astype(jnp.float32).reshape(C_out, 1)

    # Fold Nb batch elements into each grid step (largest divisor of N <= cap).
    nb = 1
    for d in range(1, min(batch_block, N) + 1):
        if N % d == 0:
            nb = d
    grid_n = N // nb

    pad = n_adj * dilation
    roll_sign = _roll_sign(cdt.name) if (pad > 0 and L % 128 == 0) else 0
    use_roll = roll_sign != 0

    kernel = functools.partial(
        _dilated_circ_conv_kernel, n_adj=n_adj, dilation=dilation,
        use_roll=use_roll, roll_sign=roll_sign if use_roll else 1)

    cost = pl.CostEstimate(
        flops=2 * N * C_out * K * C_in * L,
        transcendentals=0,
        bytes_accessed=(N * C_in_p * L + C_out * K * C_in_p) * cdt.itemsize
                       + N * C_out * L * jnp.dtype(out_dtype).itemsize)

    return pl.pallas_call(
        kernel,
        out_shape=jax.ShapeDtypeStruct((N, C_out, L), out_dtype),
        grid_spec=pltpu.PrefetchScalarGridSpec(
            num_scalar_prefetch=0,
            grid=(grid_n,),
            in_specs=[
                # Nb batch elements per grid step (leading block dim).
                pl.BlockSpec((nb, C_in_p, L), lambda i: (i, 0, 0)),
                # Weights / bias: same full block every step (stay resident).
                pl.BlockSpec((C_out, K * C_in_p), lambda i: (0, 0)),
                pl.BlockSpec((C_out, 1), lambda i: (0, 0)),
            ],
            out_specs=pl.BlockSpec((nb, C_out, L), lambda i: (i, 0, 0)),
        ),
        compiler_params=pltpu.CompilerParams(
            dimension_semantics=("parallel",),  # megacore split over batch blocks
        ),
        cost_estimate=cost,
    )(xc, w2, b2)


# ---------------------------------------------------------------------------
# Pure-JAX reference (matches PyTorch: circular cat-pad + Conv1d + bias)
# ---------------------------------------------------------------------------
def _reference(x, weight, bias, *, n_adj, dilation):
    pad = n_adj * dilation
    xp = jnp.concatenate([x[..., -pad:], x, x[..., :pad]], axis=-1) if n_adj else x
    C_out, _, K = weight.shape
    N, _, L = x.shape
    conv = jnp.zeros((N, C_out, L), jnp.float32)
    for k in range(K):
        conv = conv + jnp.einsum(
            'oc,ncl->nol',
            weight[:, :, k].astype(jnp.float32),
            xp[:, :, k * dilation:k * dilation + L].astype(jnp.float32))
    conv = conv + bias[None, :, None].astype(jnp.float32)
    return conv.astype(x.dtype)


if __name__ == "__main__":
    key = jax.random.PRNGKey(0)
    k1, k2, k3, k4, k5, k6 = jax.random.split(key, 6)

    def make_params(kw, kb, c_in, c_out, K):
        fan_in = c_in * K
        bound = 1.0 / (fan_in ** 0.5)
        w = jax.random.uniform(kw, (c_out, c_in, K), jnp.float32, -bound, bound)
        b = jax.random.uniform(kb, (c_out,), jnp.float32, -bound, bound)
        return w, b

    # --- Config 1: lane-aligned L -> roll path, batch folding, bf16 operands.
    N, C_in, C_out, L, n_adj = 8, 12, 10, 128, 4
    K = 2 * n_adj + 1
    x = jax.random.normal(k1, (N, C_in, L), dtype=jnp.float32)
    weight, bias = make_params(k2, k3, C_in, C_out, K)
    # Reference computed from the same bf16-quantized operands (f32 accumulate).
    x_q = x.astype(jnp.bfloat16).astype(jnp.float32)
    w_q = weight.astype(jnp.bfloat16).astype(jnp.float32)

    for dil in (1, 2):  # 'grid' and dilated 'dgrid' variants of the module
        out = jax.block_until_ready(
            dilated_circ_conv(x, weight, bias, n_adj=n_adj, dilation=dil,
                              batch_block=4, compute_dtype=jnp.bfloat16))
        ref = _reference(x_q, w_q, bias, n_adj=n_adj, dilation=dil)
        assert out.shape == (N, C_out, L)
        assert jnp.allclose(out, ref, atol=1e-2, rtol=1e-2), (
            f"mismatch (dilation={dil}): {float(jnp.max(jnp.abs(out - ref)))}")

    # --- Config 2: small, non-lane-aligned L -> concat fallback path, f32.
    N2, C_in2, C_out2, L2, n_adj2 = 2, 4, 8, 16, 4
    K2 = 2 * n_adj2 + 1
    x2 = jax.random.normal(k4, (N2, C_in2, L2), dtype=jnp.float32)
    w2_, b2_ = make_params(k5, k6, C_in2, C_out2, K2)
    out2 = jax.block_until_ready(
        dilated_circ_conv(x2, w2_, b2_, n_adj=n_adj2, dilation=1))
    ref2 = _reference(x2, w2_, b2_, n_adj=n_adj2, dilation=1)
    assert out2.shape == (N2, C_out2, L2)
    assert jnp.allclose(out2, ref2, atol=1e-4, rtol=1e-4)

    print("KERNEL_OK")
</pallas_src>

<mosaic_0001>
module attributes {stable_mosaic.version = 11 : i64} {
  func.func @probe(%arg0: memref<16x128xbf16, #tpu.memory_space<vmem>>, %arg1: memref<16x128xbf16, #tpu.memory_space<vmem>>) attributes {dimension_semantics = [], scalar_prefetch = 0 : i64, scratch_operands = 0 : i64, tpu.core_type = #tpu.core_type<tc>} {
    %c0 = arith.constant 0 : index
    %c0_0 = arith.constant 0 : index
    %0 = vector.load %arg0[%c0, %c0_0] : memref<16x128xbf16, #tpu.memory_space<vmem>>, vector<16x128xbf16>
    %c1_i32 = arith.constant 1 : i32
    %1 = tpu.dynamic_rotate %0 by %c1_i32 dim 1 : vector<16x128xbf16>, i32 -> vector<16x128xbf16>
    %c0_1 = arith.constant 0 : index
    %c0_2 = arith.constant 0 : index
    %2 = vector.load %arg1[%c0_1, %c0_2] : memref<16x128xbf16, #tpu.memory_space<vmem>>, vector<16x128xbf16>
    tpu.vector_store %arg1[%c0_1, %c0_2], %1 {strides = array<i32>} : memref<16x128xbf16, #tpu.memory_space<vmem>>, vector<16x128xbf16>,
    return
  }
}

module attributes {stable_mosaic.version = 11 : i64} {
  func.func @_dilated_circ_conv_kernel(%arg0: i32, %arg1: memref<4x16x128xbf16, #tpu.memory_space<vmem>>, %arg2: memref<10x144xbf16, #tpu.memory_space<vmem>>, %arg3: memref<10x1xf32, #tpu.memory_space<vmem>>, %arg4: memref<4x10x128xf32, #tpu.memory_space<vmem>>) attributes {dimension_semantics = [#tpu.dimension_semantics<parallel>], iteration_bounds = array<i64: 2>, scalar_prefetch = 0 : i64, scratch_operands = 0 : i64, tpu.core_type = #tpu.core_type<tc>, window_params = [{transform_indices = @transform_0, window_bounds = array<i64: 4, 16, 128>}, {pipeline_mode = #tpu.pipeline_mode<synchronous>, transform_indices = @transform_1, window_bounds = array<i64: 10, 144>}, {pipeline_mode = #tpu.pipeline_mode<synchronous>, transform_indices = @transform_2, window_bounds = array<i64: 10, 1>}, {transform_indices = @transform_3, window_bounds = array<i64: 4, 10, 128>}]} {
    %c0 = arith.constant 0 : index
    %c0_0 = arith.constant 0 : index
    %0 = vector.load %arg2[%c0, %c0_0] : memref<10x144xbf16, #tpu.memory_space<vmem>>, vector<10x144xbf16>
    %c0_1 = arith.constant 0 : index
    %c0_2 = arith.constant 0 : index
    %1 = vector.load %arg3[%c0_1, %c0_2] : memref<10x1xf32, #tpu.memory_space<vmem>>, vector<10x1xf32>
    %2 = vector.shape_cast %1 : vector<10x1xf32> to vector<10x1xf32>
    %3 = vector.broadcast %2 : vector<10x1xf32> to vector<10x128xf32>
    %c0_3 = arith.constant 0 : index
    %c0_4 = arith.constant 0 : index
    %c0_5 = arith.constant 0 : index
    %4 = vector.load %arg1[%c0_3, %c0_4, %c0_5] : memref<4x16x128xbf16, #tpu.memory_space<vmem>>, vector<1x16x128xbf16>
    %5 = vector.shape_cast %4 : vector<1x16x128xbf16> to vector<16x128xbf16>
    %6 = vector.extract_strided_slice %5 {offsets = [0, 124], sizes = [16, 4], strides = [1, 1]} : vector<16x128xbf16> to vector<16x4xbf16>
    %7 = vector.extract_strided_slice %5 {offsets = [0, 0], sizes = [16, 4], strides = [1, 1]} : vector<16x128xbf16> to vector<16x4xbf16>
    %8 = tpu.concatenate %6, %5, %7 in 1 : vector<16x4xbf16>, vector<16x128xbf16>, vector<16x4xbf16> -> vector<16x136xbf16>
    %9 = vector.extract_strided_slice %8 {offsets = [0, 0], sizes = [16, 128], strides = [1, 1]} : vector<16x136xbf16> to vector<16x128xbf16>
    %10 = vector.extract_strided_slice %8 {offsets = [0, 1], sizes = [16, 128], strides = [1, 1]} : vector<16x136xbf16> to vector<16x128xbf16>
    %11 = vector.extract_strided_slice %8 {offsets = [0, 2], sizes = [16, 128], strides = [1, 1]} : vector<16x136xbf16> to vector<16x128xbf16>
    %12 = vector.extract_strided_slice %8 {offsets = [0, 3], sizes = [16, 128], strides = [1, 1]} : vector<16x136xbf16> to vector<16x128xbf16>
    %13 = vector.extract_strided_slice %8 {offsets = [0, 4], sizes = [16, 128], strides = [1, 1]} : vector<16x136xbf16> to vector<16x128xbf16>
    %14 = vector.extract_strided_slice %8 {offsets = [0, 5], sizes = [16, 128], strides = [1, 1]} : vector<16x136xbf16> to vector<16x128xbf16>
    %15 = vector.extract_strided_slice %8 {offsets = [0, 6], sizes = [16, 128], strides = [1, 1]} : vector<16x136xbf16> to vector<16x128xbf16>
    %16 = vector.extract_strided_slice %8 {offsets = [0, 7], sizes = [16, 128], strides = [1, 1]} : vector<16x136xbf16> to vector<16x128xbf16>
    %17 = vector.extract_strided_slice %8 {offsets = [0, 8], sizes = [16, 128], strides = [1, 1]} : vector<16x136xbf16> to vector<16x128xbf16>
    %18 = tpu.concatenate %9, %10, %11, %12, %13, %14, %15, %16, %17 in 0 : vector<16x128xbf16>, vector<16x128xbf16>, vector<16x128xbf16>, vector<16x128xbf16>, vector<16x128xbf16>, vector<16x128xbf16>, vector<16x128xbf16>, vector<16x128xbf16>, vector<16x128xbf16> -> vector<144x128xbf16>
    %cst = arith.constant dense<0.000000e+00> : vector<10x128xf32>
    %19 = tpu.matmul %0, %18, %cst {dimension_numbers = #tpu.dot_dimension_numbers<[1], [0], [0], [1], [0, 0, 1, 1], [], []>} : vector<10x144xbf16>, vector<144x128xbf16>, vector<10x128xf32> -> vector<10x128xf32>
    %20 = arith.addf %19, %3 : vector<10x128xf32>
    %c0_6 = arith.constant 0 : index
    %c0_7 = arith.constant 0 : index
    %c0_8 = arith.constant 0 : index
    %21 = vector.load %arg4[%c0_6, %c0_7, %c0_8] : memref<4x10x128xf32, #tpu.memory_space<vmem>>, vector<1x10x128xf32>
    %22 = vector.shape_cast %21 : vector<1x10x128xf32> to vector<10x128xf32>
    %23 = vector.shape_cast %20 : vector<10x128xf32> to vector<1x10x128xf32>
    tpu.vector_store %arg4[%c0_6, %c0_7, %c0_8], %23 {strides = array<i32>} : memref<4x10x128xf32, #tpu.memory_space<vmem>>, vector<1x10x128xf32>,
    %c1 = arith.constant 1 : index
    %c0_9 = arith.constant 0 : index
    %c0_10 = arith.constant 0 : index
    %24 = vector.load %arg1[%c1, %c0_9, %c0_10] : memref<4x16x128xbf16, #tpu.memory_space<vmem>>, vector<1x16x128xbf16>
    %25 = vector.shape_cast %24 : vector<1x16x128xbf16> to vector<16x128xbf16>
    %26 = vector.extract_strided_slice %25 {offsets = [0, 124], sizes = [16, 4], strides = [1, 1]} : vector<16x128xbf16> to vector<16x4xbf16>
    %27 = vector.extract_strided_slice %25 {offsets = [0, 0], sizes = [16, 4], strides = [1, 1]} : vector<16x128xbf16> to vector<16x4xbf16>
    %28 = tpu.concatenate %26, %25, %27 in 1 : vector<16x4xbf16>, vector<16x128xbf16>, vector<16x4xbf16> -> vector<16x136xbf16>
    %29 = vector.extract_strided_slice %28 {offsets = [0, 0], sizes = [16, 128], strides = [1, 1]} : vector<16x136xbf16> to vector<16x128xbf16>
    %30 = vector.extract_strided_slice %28 {offsets = [0, 1], sizes = [16, 128], strides = [1, 1]} : vector<16x136xbf16> to vector<16x128xbf16>
    %31 = vector.extract_strided_slice %28 {offsets = [0, 2], sizes = [16, 128], strides = [1, 1]} : vector<16x136xbf16> to vector<16x128xbf16>
    %32 = vector.extract_strided_slice %28 {offsets = [0, 3], sizes = [16, 128], strides = [1, 1]} : vector<16x136xbf16> to vector<16x128xbf16>
    %33 = vector.extract_strided_slice %28 {offsets = [0, 4], sizes = [16, 128], strides = [1, 1]} : vector<16x136xbf16> to vector<16x128xbf16>
    %34 = vector.extract_strided_slice %28 {offsets = [0, 5], sizes = [16, 128], strides = [1, 1]} : vector<16x136xbf16> to vector<16x128xbf16>
    %35 = vector.extract_strided_slice %28 {offsets = [0, 6], sizes = [16, 128], strides = [1, 1]} : vector<16x136xbf16> to vector<16x128xbf16>
    %36 = vector.extract_strided_slice %28 {offsets = [0, 7], sizes = [16, 128], strides = [1, 1]} : vector<16x136xbf16> to vector<16x128xbf16>
    %37 = vector.extract_strided_slice %28 {offsets = [0, 8], sizes = [16, 128], strides = [1, 1]} : vector<16x136xbf16> to vector<16x128xbf16>
    %38 = tpu.concatenate %29, %30, %31, %32, %33, %34, %35, %36, %37 in 0 : vector<16x128xbf16>, vector<16x128xbf16>, vector<16x128xbf16>, vector<16x128xbf16>, vector<16x128xbf16>, vector<16x128xbf16>, vector<16x128xbf16>, vector<16x128xbf16>, vector<16x128xbf16> -> vector<144x128xbf16>
    %cst_11 = arith.constant dense<0.000000e+00> : vector<10x128xf32>
    %39 = tpu.matmul %0, %38, %cst_11 {dimension_numbers = #tpu.dot_dimension_numbers<[1], [0], [0], [1], [0, 0, 1, 1], [], []>} : vector<10x144xbf16>, vector<144x128xbf16>, vector<10x128xf32> -> vector<10x128xf32>
    %40 = arith.addf %39, %3 : vector<10x128xf32>
    %c1_12 = arith.constant 1 : index
    %c0_13 = arith.constant 0 : index
    %c0_14 = arith.constant 0 : index
    %41 = vector.load %arg4[%c1_12, %c0_13, %c0_14] : memref<4x10x128xf32, #tpu.memory_space<vmem>>, vector<1x10x128xf32>
    %42 = vector.shape_cast %41 : vector<1x10x128xf32> to vector<10x128xf32>
    %43 = vector.shape_cast %40 : vector<10x128xf32> to vector<1x10x128xf32>
    tpu.vector_store %arg4[%c1_12, %c0_13, %c0_14], %43 {strides = array<i32>} : memref<4x10x128xf32, #tpu.memory_space<vmem>>, vector<1x10x128xf32>,
    %c2 = arith.constant 2 : index
    %c0_15 = arith.constant 0 : index
    %c0_16 = arith.constant 0 : index
    %44 = vector.load %arg1[%c2, %c0_15, %c0_16] : memref<4x16x128xbf16, #tpu.memory_space<vmem>>, vector<1x16x128xbf16>
    %45 = vector.shape_cast %44 : vector<1x16x128xbf16> to vector<16x128xbf16>
    %46 = vector.extract_strided_slice %45 {offsets = [0, 124], sizes = [16, 4], strides = [1, 1]} : vector<16x128xbf16> to vector<16x4xbf16>
    %47 = vector.extract_strided_slice %45 {offsets = [0, 0], sizes = [16, 4], strides = [1, 1]} : vector<16x128xbf16> to vector<16x4xbf16>
    %48 = tpu.concatenate %46, %45, %47 in 1 : vector<16x4xbf16>, vector<16x128xbf16>, vector<16x4xbf16> -> vector<16x136xbf16>
    %49 = vector.extract_strided_slice %48 {offsets = [0, 0], sizes = [16, 128], strides = [1, 1]} : vector<16x136xbf16> to vector<16x128xbf16>
    %50 = vector.extract_strided_slice %48 {offsets = [0, 1], sizes = [16, 128], strides = [1, 1]} : vector<16x136xbf16> to vector<16x128xbf16>
    %51 = vector.extract_strided_slice %48 {offsets = [0, 2], sizes = [16, 128], strides = [1, 1]} : vector<16x136xbf16> to vector<16x128xbf16>
    %52 = vector.extract_strided_slice %48 {offsets = [0, 3], sizes = [16, 128], strides = [1, 1]} : vector<16x136xbf16> to vector<16x128xbf16>
    %53 = vector.extract_strided_slice %48 {offsets = [0, 4], sizes = [16, 128], strides = [1, 1]} : vector<16x136xbf16> to vector<16x128xbf16>
    %54 = vector.extract_strided_slice %48 {offsets = [0, 5], sizes = [16, 128], strides = [1, 1]} : vector<16x136xbf16> to vector<16x128xbf16>
    %55 = vector.extract_strided_slice %48 {offsets = [0, 6], sizes = [16, 128], strides = [1, 1]} : vector<16x136xbf16> to vector<16x128xbf16>
    %56 = vector.extract_strided_slice %48 {offsets = [0, 7], sizes = [16, 128], strides = [1, 1]} : vector<16x136xbf16> to vector<16x128xbf16>
    %57 = vector.extract_strided_slice %48 {offsets = [0, 8], sizes = [16, 128], strides = [1, 1]} : vector<16x136xbf16> to vector<16x128xbf16>
    %58 = tpu.concatenate %49, %50, %51, %52, %53, %54, %55, %56, %57 in 0 : vector<16x128xbf16>, vector<16x128xbf16>, vector<16x128xbf16>, vector<16x128xbf16>, vector<16x128xbf16>, vector<16x128xbf16>, vector<16x128xbf16>, vector<16x128xbf16>, vector<16x128xbf16> -> vector<144x128xbf16>
    %cst_17 = arith.constant dense<0.000000e+00> : vector<10x128xf32>
    %59 = tpu.matmul %0, %58, %cst_17 {dimension_numbers = #tpu.dot_dimension_numbers<[1], [0], [0], [1], [0, 0, 1, 1], [], []>} : vector<10x144xbf16>, vector<144x128xbf16>, vector<10x128xf32> -> vector<10x128xf32>
    %60 = arith.addf %59, %3 : vector<10x128xf32>
    %c2_18 = arith.constant 2 : index
    %c0_19 = arith.constant 0 : index
    %c0_20 = arith.constant 0 : index
    %61 = vector.load %arg4[%c2_18, %c0_19, %c0_20] : memref<4x10x128xf32, #tpu.memory_space<vmem>>, vector<1x10x128xf32>
    %62 = vector.shape_cast %61 : vector<1x10x128xf32> to vector<10x128xf32>
    %63 = vector.shape_cast %60 : vector<10x128xf32> to vector<1x10x128xf32>
    tpu.vector_store %arg4[%c2_18, %c0_19, %c0_20], %63 {strides = array<i32>} : memref<4x10x128xf32, #tpu.memory_space<vmem>>, vector<1x10x128xf32>,
    %c3 = arith.constant 3 : index
    %c0_21 = arith.constant 0 : index
    %c0_22 = arith.constant 0 : index
    %64 = vector.load %arg1[%c3, %c0_21, %c0_22] : memref<4x16x128xbf16, #tpu.memory_space<vmem>>, vector<1x16x128xbf16>
    %65 = vector.shape_cast %64 : vector<1x16x128xbf16> to vector<16x128xbf16>
    %66 = vector.extract_strided_slice %65 {offsets = [0, 124], sizes = [16, 4], strides = [1, 1]} : vector<16x128xbf16> to vector<16x4xbf16>
    %67 = vector.extract_strided_slice %65 {offsets = [0, 0], sizes = [16, 4], strides = [1, 1]} : vector<16x128xbf16> to vector<16x4xbf16>
    %68 = tpu.concatenate %66, %65, %67 in 1 : vector<16x4xbf16>, vector<16x128xbf16>, vector<16x4xbf16> -> vector<16x136xbf16>
    %69 = vector.extract_strided_slice %68 {offsets = [0, 0], sizes = [16, 128], strides = [1, 1]} : vector<16x136xbf16> to vector<16x128xbf16>
    %70 = vector.extract_strided_slice %68 {offsets = [0, 1], sizes = [16, 128], strides = [1, 1]} : vector<16x136xbf16> to vector<16x128xbf16>
    %71 = vector.extract_strided_slice %68 {offsets = [0, 2], sizes = [16, 128], strides = [1, 1]} : vector<16x136xbf16> to vector<16x128xbf16>
    %72 = vector.extract_strided_slice %68 {offsets = [0, 3], sizes = [16, 128], strides = [1, 1]} : vector<16x136xbf16> to vector<16x128xbf16>
    %73 = vector.extract_strided_slice %68 {offsets = [0, 4], sizes = [16, 128], strides = [1, 1]} : vector<16x136xbf16> to vector<16x128xbf16>
    %74 = vector.extract_strided_slice %68 {offsets = [0, 5], sizes = [16, 128], strides = [1, 1]} : vector<16x136xbf16> to vector<16x128xbf16>
    %75 = vector.extract_strided_slice %68 {offsets = [0, 6], sizes = [16, 128], strides = [1, 1]} : vector<16x136xbf16> to vector<16x128xbf16>
    %76 = vector.extract_strided_slice %68 {offsets = [0, 7], sizes = [16, 128], strides = [1, 1]} : vector<16x136xbf16> to vector<16x128xbf16>
    %77 = vector.extract_strided_slice %68 {offsets = [0, 8], sizes = [16, 128], strides = [1, 1]} : vector<16x136xbf16> to vector<16x128xbf16>
    %78 = tpu.concatenate %69, %70, %71, %72, %73, %74, %75, %76, %77 in 0 : vector<16x128xbf16>, vector<16x128xbf16>, vector<16x128xbf16>, vector<16x128xbf16>, vector<16x128xbf16>, vector<16x128xbf16>, vector<16x128xbf16>, vector<16x128xbf16>, vector<16x128xbf16> -> vector<144x128xbf16>
    %cst_23 = arith.constant dense<0.000000e+00> : vector<10x128xf32>
    %79 = tpu.matmul %0, %78, %cst_23 {dimension_numbers = #tpu.dot_dimension_numbers<[1], [0], [0], [1], [0, 0, 1, 1], [], []>} : vector<10x144xbf16>, vector<144x128xbf16>, vector<10x128xf32> -> vector<10x128xf32>
    %80 = arith.addf %79, %3 : vector<10x128xf32>
    %c3_24 = arith.constant 3 : index
    %c0_25 = arith.constant 0 : index
    %c0_26 = arith.constant 0 : index
    %81 = vector.load %arg4[%c3_24, %c0_25, %c0_26] : memref<4x10x128xf32, #tpu.memory_space<vmem>>, vector<1x10x128xf32>
    %82 = vector.shape_cast %81 : vector<1x10x128xf32> to vector<10x128xf32>
    %83 = vector.shape_cast %80 : vector<10x128xf32> to vector<1x10x128xf32>
    tpu.vector_store %arg4[%c3_24, %c0_25, %c0_26], %83 {strides = array<i32>} : memref<4x10x128xf32, #tpu.memory_space<vmem>>, vector<1x10x128xf32>,
    return
  }
  func.func @transform_0(%arg0: i32) -> (i32, i32, i32) {
    %c0_i32 = arith.constant 0 : i32
    %c0_i32_0 = arith.constant 0 : i32
    %c0_i32_1 = arith.constant 0 : i32
    return %arg0, %c0_i32, %c0_i32_0 : i32, i32, i32
  }
  func.func @transform_1(%arg0: i32) -> (i32, i32) {
    %c0_i32 = arith.constant 0 : i32
    %c0_i32_0 = arith.constant 0 : i32
    %c0_i32_1 = arith.constant 0 : i32
    return %c0_i32, %c0_i32_0 : i32, i32
  }
  func.func @transform_2(%arg0: i32) -> (i32, i32) {
    %c0_i32 = arith.constant 0 : i32
    %c0_i32_0 = arith.constant 0 : i32
    %c0_i32_1 = arith.constant 0 : i32
    return %c0_i32, %c0_i32_0 : i32, i32
  }
  func.func @transform_3(%arg0: i32) -> (i32, i32, i32) {
    %c0_i32 = arith.constant 0 : i32
    %c0_i32_0 = arith.constant 0 : i32
    %c0_i32_1 = arith.constant 0 : i32
    return %arg0, %c0_i32, %c0_i32_0 : i32, i32, i32
  }
}

</mosaic_0001>

<llo_original>
// kernel: tpu_custom_call.1
$region0: #{tpu_custom_call.1}
  #allocation0 [shape = 'u32[]', space=smem, size = 0x4, offset = 0x4, fixed_abs, tag = 'smem constant byte address 0x4 - core index']
  #allocation1 [shape = 'u32[144,128]{1,0:T(1,128)}', space=vmem, size = 0x12000, scoped, tag = 'internal scratch']
  %s0 = inlined_call_operand.hbm [shape: bf16[8,16,128], index: 0, kind: input, shape index: {}]
  %s1 = inlined_call_operand.vmem [shape: bf16[10,144], index: 1, kind: input, shape index: {}]
  %s2 = inlined_call_operand.vmem [shape: f32[10,1], index: 2, kind: input, shape index: {}]
  %s3 = inlined_call_operand.vmem [shape: f32[8,10,128], index: 3, kind: output, shape index: {}]
  %s4 = sld [smem:[#allocation0]]
  $region49: #{tpu_custom_call.1} parent=0
    _
  %s6 = ssub.s32 1, %s4
  %s7 = scalar_select 0, %s6, %s4
  $region1: #{tpu_custom_call.1} parent=0
    #allocation2 [shape = 'u8[32768]{0}', space=vmem, size = 0x8000, scoped, tag = 'input window, operand 0']
    #allocation3 [shape = 's32[2]{0}', space=sflag, size = 0x8, scoped, tag = 'scoped memory for tpu_custom_call.1']
    %8 = vsyncpa [#allocation3], 0
    %s9 = scalar_lea.sflag [#allocation3], 1
    %10 = vsyncpa %s9, 0
    loop: start=0, step=1, limit=4
    $region2: #{tpu_custom_call.1} parent=1 // loop_pre_header
      _
    $region3: #{tpu_custom_call.1} parent=1 // loop_header
      %s12 = sphi 0, %s16
      %p13 = scmp.ge.s32.totalorder %s12, 4
      %s22 = sphi 0, %s24
      %s25 = sphi 0, %s22
      %s26 = sphi 0, %s25
      %s42 = sphi 0, %s26
      %s46 = sphi 0, %s46
      %s48 = sphi 0, %s46
      %s49 = sphi 0, %s48
      %s63 = sphi 0, %s49
      %s67 = sphi 0, %s67
      %s69 = sphi 0, %s67
      %s70 = sphi 0, %s69
      %s84 = sphi 0, %s70
      %s90 = sphi 0, %s92
      %s93 = sphi 0, %s90
      %s94 = sphi 0, %s93
      %s110 = sphi 0, %s94
    $region4: #{tpu_custom_call.1} parent=1 // loop_header_branch
      %15 = sbr.rel (%p13) target = $region8
    $region5: #{tpu_custom_call.1} parent=1 // loop_body
      %s17 = ssub.s32 %s12, 1
      %s18 = ssub.s32 %s12, 2
      %s19 = sadd.s32 %s12, 1
      %s20 = ssub.s32 %s12, %s19
      %p21 = scmp.eq.s32.totalorder %s20, 0
      %s23 = sadd.s32 %s22, 1
      %s24 = scalar_select %p21, %s22, %s23
      %p27 = pneg %p21
      %p28 = scmp.eq.s32.totalorder %s12, 1
      %p29 = por %p27, %p28
      %p30 = scmp.ne.s32.totalorder %s22, %s25
      %p31 = scmp.eq.s32.totalorder %s12, 0
      %p32 = por %p30, %p31
      %p33 = scmp.ne.s32.totalorder %s22, %s25
      %p34 = scmp.eq.s32.totalorder %s17, 1
      %p35 = por %p33, %p34
      %p36 = scmp.ne.s32.totalorder %s25, %s26
      %p37 = scmp.eq.s32.totalorder %s17, 0
      %p38 = por %p36, %p37
      %p39 = scmp.ne.s32.totalorder %s25, %s26
      %p40 = scmp.eq.s32.totalorder %s18, 1
      %p41 = por %p39, %p40
      %p43 = scmp.ne.s32.totalorder %s26, %s42
      %p44 = scmp.eq.s32.totalorder %s18, 0
      %p45 = por %p43, %p44
      %s47 = sadd.s32 %s46, 1
      %p50 = scmp.eq.s32.totalorder %s12, 1
      %p51 = scmp.ne.s32.totalorder %s46, %s48
      %p52 = scmp.eq.s32.totalorder %s12, 0
      %p53 = por %p51, %p52
      %p54 = scmp.ne.s32.totalorder %s46, %s48
      %p55 = scmp.eq.s32.totalorder %s17, 1
      %p56 = por %p54, %p55
      %p57 = scmp.ne.s32.totalorder %s48, %s49
      %p58 = scmp.eq.s32.totalorder %s17, 0
      %p59 = por %p57, %p58
      %p60 = scmp.ne.s32.totalorder %s48, %s49
      %p61 = scmp.eq.s32.totalorder %s18, 1
      %p62 = por %p60, %p61
      %p64 = scmp.ne.s32.totalorder %s49, %s63
      %p65 = scmp.eq.s32.totalorder %s18, 0
      %p66 = por %p64, %p65
      %s68 = sadd.s32 %s67, 1
      %p71 = scmp.eq.s32.totalorder %s12, 1
      %p72 = scmp.ne.s32.totalorder %s67, %s69
      %p73 = scmp.eq.s32.totalorder %s12, 0
      %p74 = por %p72, %p73
      %p75 = scmp.ne.s32.totalorder %s67, %s69
      %p76 = scmp.eq.s32.totalorder %s17, 1
      %p77 = por %p75, %p76
      %p78 = scmp.ne.s32.totalorder %s69, %s70
      %p79 = scmp.eq.s32.totalorder %s17, 0
      %p80 = por %p78, %p79
      %p81 = scmp.ne.s32.totalorder %s69, %s70
      %p82 = scmp.eq.s32.totalorder %s18, 1
      %p83 = por %p81, %p82
      %p85 = scmp.ne.s32.totalorder %s70, %s84
      %p86 = scmp.eq.s32.totalorder %s18, 0
      %p87 = por %p85, %p86
      %s88 = ssub.s32 %s12, %s19
      %p89 = scmp.eq.s32.totalorder %s88, 0
      %s91 = sadd.s32 %s90, 1
      %s92 = scalar_select %p89, %s90, %s91
      %p95 = pneg %p89
      %p96 = scmp.eq.s32.totalorder %s12, 1
      %p97 = por %p95, %p96
      %p98 = scmp.ne.s32.totalorder %s90, %s93
      %p99 = scmp.eq.s32.totalorder %s12, 0
      %p100 = por %p98, %p99
      %p101 = scmp.ne.s32.totalorder %s90, %s93
      %p102 = scmp.eq.s32.totalorder %s17, 1
      %p103 = por %p101, %p102
      %p104 = scmp.ne.s32.totalorder %s93, %s94
      %p105 = scmp.eq.s32.totalorder %s17, 0
      %p106 = por %p104, %p105
      %p107 = scmp.ne.s32.totalorder %s93, %s94
      %p108 = scmp.eq.s32.totalorder %s18, 1
      %p109 = por %p107, %p108
      %p111 = scmp.ne.s32.totalorder %s94, %s110
      %p112 = scmp.eq.s32.totalorder %s18, 0
      %p113 = por %p111, %p112
      %p114 = scmp.le.s32.totalorder 1, %s12
      %p115 = scmp.lt.s32.totalorder %s12, 3
      %p116 = pnand %p114, %p115
      %p117 = pneg %p116
      // Predicated region
      $region9: #{tpu_custom_call.1} parent=5 // pred_check
        _
      $region10: #{tpu_custom_call.1} parent=5 // pred_check_branch
        %119 = sbr.rel (%p116) target = $region12
      $region11: #{tpu_custom_call.1} parent=5 // pred_region
        %s120 = ssub.s32 %s12, 1
        // Predicated region
        $region13: #{tpu_custom_call.1} parent=11 // pred_check
          %p121 = pneg %p59
        $region14: #{tpu_custom_call.1} parent=11 // pred_check_branch
          %123 = sbr.rel (%p121) target = $region16
        $region15: #{tpu_custom_call.1} parent=11 // pred_region
          _
        $region16: #{tpu_custom_call.1} parent=11 // pred_fallthru
          _
        // Predicated region
        $region17: #{tpu_custom_call.1} parent=11 // pred_check
          %p124 = pneg %p80
        $region18: #{tpu_custom_call.1} parent=11 // pred_check_branch
          %126 = sbr.rel (%p124) target = $region20
        $region19: #{tpu_custom_call.1} parent=11 // pred_region
          _
        $region20: #{tpu_custom_call.1} parent=11 // pred_fallthru
          _
      $region12: #{tpu_custom_call.1} parent=5 // pred_fallthru
        _
      %p127 = scmp.lt.s32.totalorder %s12, 2
      // Predicated region
      $region21: #{tpu_custom_call.1} parent=5 // pred_check
        %p128 = pneg %p127
      $region22: #{tpu_custom_call.1} parent=5 // pred_check_branch
        %130 = sbr.rel (%p128) target = $region24
      $region23: #{tpu_custom_call.1} parent=5 // pred_region
        // Predicated region
        $region25: #{tpu_custom_call.1} parent=23 // pred_check
          %p131 = pneg %p32
        $region26: #{tpu_custom_call.1} parent=23 // pred_check_branch
          %133 = sbr.rel (%p131) target = $region28
        $region27: #{tpu_custom_call.1} parent=23 // pred_region
          %s134 = sand.u32 %s22, 1
          %s135 = scalar_lea.sflag [#allocation3], %s134
          %s136 = sand.u32 %s22, 1
          %s137 = smul.addr %s136, 32
          %s138 = scalar_lea.vmem [#allocation2], %s137
          %s139 = smul.u32 4, %s12
          %s141 = ssub.s32 512, 512
          %142 = vsyncadd %s135, %s141
          %s143 = smul.addr %s139, 2
          %s144 = smul.addr %s143, 64
          %s145 = scalar_lea.hbm %s0, %s144
          %s146 = sshll.u32 %s138, 4
          %s147 = int_to_ptr.vmem [resolvable:$true] %s146
          %152 = dma.hbm_to_vmem [thread:$0]  %s145, 512, %s147, %s135, 64, 64, 4
        $region28: #{tpu_custom_call.1} parent=23 // pred_fallthru
          _
      $region24: #{tpu_custom_call.1} parent=5 // pred_fallthru
        _
      %p153 = scmp.le.s32.totalorder 1, %s12
      %p154 = scmp.lt.s32.totalorder %s12, 3
      %p155 = pnand %p153, %p154
      %p156 = pneg %p155
      // Predicated region
      $region29: #{tpu_custom_call.1} parent=5 // pred_check
        _
      $region30: #{tpu_custom_call.1} parent=5 // pred_check_branch
        %158 = sbr.rel (%p155) target = $region32
      $region31: #{tpu_custom_call.1} parent=5 // pred_region
        %s159 = ssub.s32 %s12, 1
        %s160 = sand.u32 %s25, 1
        %s161 = scalar_lea.sflag [#allocation3], %s160
        %s162 = sand.u32 %s25, 1
        %s163 = smul.addr %s162, 32
        %s164 = scalar_lea.vmem [#allocation2], %s163
        // Predicated region
        $region33: #{tpu_custom_call.1} parent=31 // pred_check
          %p165 = pneg %p38
        $region34: #{tpu_custom_call.1} parent=31 // pred_check_branch
          %167 = sbr.rel (%p165) target = $region36
        $region35: #{tpu_custom_call.1} parent=31 // pred_region
          %168 = dma.done %s161, 512
        $region36: #{tpu_custom_call.1} parent=31 // pred_fallthru
          _
        %s169 = sand.u32 %s25, 1
        %s170 = scalar_lea.sflag [#allocation3], %s169
        %s171 = sand.u32 %s25, 1
        %s172 = smul.addr %s171, 32
        %s173 = scalar_lea.vmem [#allocation2], %s172
        %p174 = pneg %p38
        %p175 = pneg %p35
        %p176 = pneg %p59
        %p177 = pneg %p56
        %p178 = pneg %p80
        %p179 = pneg %p77
        %p180 = pneg %p106
        %p181 = pneg %p103
        %s182 = smul.u32 4, %s17
        %p183 = scmp.lt.s32.totalorder %s182, 7
        %s184 = scalar_select %p183, %s182, 7
        %s185 = smul.addr %s184, 2
        %s186 = smul.addr %s185, 8
        %s187 = scalar_lea.vmem %s3, %s186
        %s188 = smul.u32 4, %s17
        %s189 = smul.u32 4, %s17
        %p190 = scmp.lt.s32.totalorder %s189, 7
        %s191 = scalar_select %p190, %s189, 7
        %s192 = smul.addr %s191, 2
        %s193 = smul.addr %s192, 8
        %s194 = scalar_lea.vmem %s3, %s193
        %s195 = smul.u32 4, %s17
        %v197 = vld [vmem:[%s1] sm:$0xff]
        %v198 = vld [vmem:[%s1 + $0x8] sm:$0x11]
        %v199 = vld [vmem:[%s2] sm:$0xff]
        %v200 = vld [vmem:[%s2 + $0x8] sm:$0x3]
        %202 = vset.pattern.permute.xlu0 0
        %203 = vperm.xlu0 %202, %v199
        %v204 = vpop.permute.xlu0 %203
        %207 = vset.pattern.permute.xlu0 0
        %208 = vperm.xlu0 %207, %v200
        %v209 = vpop.permute.xlu0 %208
        %v211 = vld [vmem:[%s164] sm:$0xf]
        %v212 = vld [vmem:[%s164 + $0x4] sm:$0xf]
        %v215 = vunpack.c.l.b16 %v211
        %v216 = vunpack.c.l.b16 %v212
        %v217 = vpack.c.b16 %v216, %v215
        %218 = vrot.lane.b32.xlu0 %v217, 4
        %v219 = vpop.permute.xlu0 %218
        %223 = vrot.lane.b32.xlu0 %v219, 127
        %v224 = vpop.permute.xlu0 %223
        %226 = vrot.lane.b32.xlu0 %v219, 126
        %v227 = vpop.permute.xlu0 %226
        %229 = vrot.lane.b32.xlu0 %v219, 125
        %v230 = vpop.permute.xlu0 %229
        %232 = vrot.lane.b32.xlu0 %v219, 124
        %v233 = vpop.permute.xlu0 %232
        %235 = vrot.lane.b32.xlu0 %v219, 123
        %v236 = vpop.permute.xlu0 %235
        %238 = vrot.lane.b32.xlu0 %v219, 122
        %v239 = vpop.permute.xlu0 %238
        %241 = vrot.lane.b32.xlu0 %v219, 121
        %v242 = vpop.permute.xlu0 %241
        %244 = vrot.lane.b32.xlu0 %v219, 120
        %v245 = vpop.permute.xlu0 %244
        %v249 = vunpack.c.l.b16 %v197
        %v250 = vunpack.c.h.b16 %v197
        %v251 = vunpack.c.l.b16 %v198
        %v252 = vunpack.c.h.b16 %v198
        %v253 = vpack.c.b16 %v251, %v249
        %v254 = vpack.c.b16 %v252, %v250
        %vm256 = vcmask 130048
        %v258 = vsel %vm256, %v254, 0
        %260 = vmatprep.subr.bf16.mxu0 0
        %261 = vmatpush1.bf16.msra.mxu0 %v242
        %262 = vmatprep.subr.bf16.mxu0 0
        %263 = vmatpush1.bf16.msra.mxu0 %v239
        %264 = vmatprep.subr.bf16.mxu0 0
        %265 = vmatpush1.bf16.msra.mxu0 %v236
        %266 = vmatprep.subr.bf16.mxu0 0
        %267 = vmatpush1.bf16.msra.mxu0 %v233
        %268 = vmatprep.subr.bf16.mxu0 0
        %269 = vmatpush1.bf16.msra.mxu0 %v230
        %270 = vmatprep.subr.bf16.mxu0 0
        %271 = vmatpush1.bf16.msra.mxu0 %v227
        %272 = vmatprep.subr.bf16.mxu0 0
        %273 = vmatpush1.bf16.msra.mxu0 %v224
        %274 = vmatprep.subr.bf16.mxu0 0
        %275 = vmatpush1.bf16.msra.mxu0 %v219
        %276 = vmatprep.subr.bf16.mxu0 0
        %277 = vmatpush2.bf16.msra.mxu0 0
        %278 = vmatprep.subr.bf16.mxu0 0
        %279 = vmatpush2.bf16.msra.mxu0 0
        %280 = vmatprep.subr.bf16.mxu0 0
        %281 = vmatpush2.bf16.msra.mxu0 0
        %282 = vmatprep.subr.bf16.mxu0 0
        %283 = vmatpush2.bf16.msra.mxu0 0
        %284 = vmatprep.subr.bf16.mxu0 0
        %285 = vmatpush2.bf16.msra.mxu0 0
        %286 = vmatprep.subr.bf16.mxu0 0
        %287 = vmatpush2.bf16.msra.mxu0 0
        %288 = vmatprep.subr.bf16.mxu0 0
        %289 = vmatpush2.bf16.msra.mxu0 0
        %290 = vmatprep.subr.bf16.mxu0 0
        %291 = vmatpush2.bf16.msra.mxu0 %v245
        %292 = vmatprep.mubr.bf16.mxu0 %v258
        %293 = vmatmul.mubr.bf16.gmra.mxu0 %v253
        %v294 = vpop.f32.mrf.mxu0
        %v295 = vadd.f32 %v204, %v294
        %v296 = vpop.f32.mrf.mxu0
        %v297 = vpop.f32.mrf.mxu0
        %v298 = vadd.f32 %v209, %v297
        %v299 = vpop.f32.mrf.mxu0
        %300 = vdwg.mxu0
        %301 = vst [vmem:[%s194] sm:$0xff] %v295
        %302 = vst [vmem:[%s194 + $0x8] sm:$0x3] %v298
        %s303 = scalar_lea.vmem %s164, 8 [#allocation2]
        %v304 = vld [vmem:[%s303] sm:$0xf]
        %v305 = vld [vmem:[%s303 + $0x4] sm:$0xf]
        %v308 = vunpack.c.l.b16 %v304
        %v309 = vunpack.c.l.b16 %v305
        %v310 = vpack.c.b16 %v309, %v308
        %311 = vrot.lane.b32.xlu0 %v310, 4
        %v312 = vpop.permute.xlu0 %311
        %316 = vrot.lane.b32.xlu0 %v312, 127
        %v317 = vpop.permute.xlu0 %316
        %319 = vrot.lane.b32.xlu0 %v312, 126
        %v320 = vpop.permute.xlu0 %319
        %322 = vrot.lane.b32.xlu0 %v312, 125
        %v323 = vpop.permute.xlu0 %322
        %325 = vrot.lane.b32.xlu0 %v312, 124
        %v326 = vpop.permute.xlu0 %325
        %328 = vrot.lane.b32.xlu0 %v312, 123
        %v329 = vpop.permute.xlu0 %328
        %331 = vrot.lane.b32.xlu0 %v312, 122
        %v332 = vpop.permute.xlu0 %331
        %334 = vrot.lane.b32.xlu0 %v312, 121
        %v335 = vpop.permute.xlu0 %334
        %337 = vrot.lane.b32.xlu0 %v312, 120
        %v338 = vpop.permute.xlu0 %337
        %340 = vmatprep.subr.bf16.mxu0 0
        %341 = vmatpush1.bf16.msra.mxu0 %v335
        %342 = vmatprep.subr.bf16.mxu0 0
        %343 = vmatpush1.bf16.msra.mxu0 %v332
        %344 = vmatprep.subr.bf16.mxu0 0
        %345 = vmatpush1.bf16.msra.mxu0 %v329
        %346 = vmatprep.subr.bf16.mxu0 0
        %347 = vmatpush1.bf16.msra.mxu0 %v326
        %348 = vmatprep.subr.bf16.mxu0 0
        %349 = vmatpush1.bf16.msra.mxu0 %v323
        %350 = vmatprep.subr.bf16.mxu0 0
        %351 = vmatpush1.bf16.msra.mxu0 %v320
        %352 = vmatprep.subr.bf16.mxu0 0
        %353 = vmatpush1.bf16.msra.mxu0 %v317
        %354 = vmatprep.subr.bf16.mxu0 0
        %355 = vmatpush1.bf16.msra.mxu0 %v312
        %356 = vmatprep.subr.bf16.mxu0 0
        %357 = vmatpush2.bf16.msra.mxu0 0
        %358 = vmatprep.subr.bf16.mxu0 0
        %359 = vmatpush2.bf16.msra.mxu0 0
        %360 = vmatprep.subr.bf16.mxu0 0
        %361 = vmatpush2.bf16.msra.mxu0 0
        %362 = vmatprep.subr.bf16.mxu0 0
        %363 = vmatpush2.bf16.msra.mxu0 0
        %364 = vmatprep.subr.bf16.mxu0 0
        %365 = vmatpush2.bf16.msra.mxu0 0
        %366 = vmatprep.subr.bf16.mxu0 0
        %367 = vmatpush2.bf16.msra.mxu0 0
        %368 = vmatprep.subr.bf16.mxu0 0
        %369 = vmatpush2.bf16.msra.mxu0 0
        %370 = vmatprep.subr.bf16.mxu0 0
        %371 = vmatpush2.bf16.msra.mxu0 %v338
        %372 = vmatprep.mubr.bf16.mxu0 %v258
        %373 = vmatmul.mubr.bf16.gmra.mxu0 %v253
        %v374 = vpop.f32.mrf.mxu0
        %v375 = vadd.f32 %v204, %v374
        %v376 = vpop.f32.mrf.mxu0
        %v377 = vpop.f32.mrf.mxu0
        %v378 = vadd.f32 %v209, %v377
        %v379 = vpop.f32.mrf.mxu0
        %380 = vdwg.mxu0
        %s381 = scalar_lea.vmem %s194, 16
        %382 = vst [vmem:[%s381] sm:$0xff] %v375
        %383 = vst [vmem:[%s381 + $0x8] sm:$0x3] %v378
        %s384 = scalar_lea.vmem %s164, 16 [#allocation2]
        %v385 = vld [vmem:[%s384] sm:$0xf]
        %v386 = vld [vmem:[%s384 + $0x4] sm:$0xf]
        %v389 = vunpack.c.l.b16 %v385
        %v390 = vunpack.c.l.b16 %v386
        %v391 = vpack.c.b16 %v390, %v389
        %392 = vrot.lane.b32.xlu0 %v391, 4
        %v393 = vpop.permute.xlu0 %392
        %397 = vrot.lane.b32.xlu0 %v393, 127
        %v398 = vpop.permute.xlu0 %397
        %400 = vrot.lane.b32.xlu0 %v393, 126
        %v401 = vpop.permute.xlu0 %400
        %403 = vrot.lane.b32.xlu0 %v393, 125
        %v404 = vpop.permute.xlu0 %403
        %406 = vrot.lane.b32.xlu0 %v393, 124
        %v407 = vpop.permute.xlu0 %406
        %409 = vrot.lane.b32.xlu0 %v393, 123
        %v410 = vpop.permute.xlu0 %409
        %412 = vrot.lane.b32.xlu0 %v393, 122
        %v413 = vpop.permute.xlu0 %412
        %415 = vrot.lane.b32.xlu0 %v393, 121
        %v416 = vpop.permute.xlu0 %415
        %418 = vrot.lane.b32.xlu0 %v393, 120
        %v419 = vpop.permute.xlu0 %418
        %421 = vmatprep.subr.bf16.mxu0 0
        %422 = vmatpush1.bf16.msra.mxu0 %v416
        %423 = vmatprep.subr.bf16.mxu0 0
        %424 = vmatpush1.bf16.msra.mxu0 %v413
        %425 = vmatprep.subr.bf16.mxu0 0
        %426 = vmatpush1.bf16.msra.mxu0 %v410
        %427 = vmatprep.subr.bf16.mxu0 0
        %428 = vmatpush1.bf16.msra.mxu0 %v407
        %429 = vmatprep.subr.bf16.mxu0 0
        %430 = vmatpush1.bf16.msra.mxu0 %v404
        %431 = vmatprep.subr.bf16.mxu0 0
        %432 = vmatpush1.bf16.msra.mxu0 %v401
        %433 = vmatprep.subr.bf16.mxu0 0
        %434 = vmatpush1.bf16.msra.mxu0 %v398
        %435 = vmatprep.subr.bf16.mxu0 0
        %436 = vmatpush1.bf16.msra.mxu0 %v393
        %437 = vmatprep.subr.bf16.mxu0 0
        %438 = vmatpush2.bf16.msra.mxu0 0
        %439 = vmatprep.subr.bf16.mxu0 0
        %440 = vmatpush2.bf16.msra.mxu0 0
        %441 = vmatprep.subr.bf16.mxu0 0
        %442 = vmatpush2.bf16.msra.mxu0 0
        %443 = vmatprep.subr.bf16.mxu0 0
        %444 = vmatpush2.bf16.msra.mxu0 0
        %445 = vmatprep.subr.bf16.mxu0 0
        %446 = vmatpush2.bf16.msra.mxu0 0
        %447 = vmatprep.subr.bf16.mxu0 0
        %448 = vmatpush2.bf16.msra.mxu0 0
        %449 = vmatprep.subr.bf16.mxu0 0
        %450 = vmatpush2.bf16.msra.mxu0 0
        %451 = vmatprep.subr.bf16.mxu0 0
        %452 = vmatpush2.bf16.msra.mxu0 %v419
        %453 = vmatprep.mubr.bf16.mxu0 %v258
        %454 = vmatmul.mubr.bf16.gmra.mxu0 %v253
        %v455 = vpop.f32.mrf.mxu0
        %v456 = vadd.f32 %v204, %v455
        %v457 = vpop.f32.mrf.mxu0
        %v458 = vpop.f32.mrf.mxu0
        %v459 = vadd.f32 %v209, %v458
        %v460 = vpop.f32.mrf.mxu0
        %461 = vdwg.mxu0
        %s462 = scalar_lea.vmem %s194, 32
        %463 = vst [vmem:[%s462] sm:$0xff] %v456
        %464 = vst [vmem:[%s462 + $0x8] sm:$0x3] %v459
        %s465 = scalar_lea.vmem %s164, 24 [#allocation2]
        %v466 = vld [vmem:[%s465] sm:$0xf]
        %v467 = vld [vmem:[%s465 + $0x4] sm:$0xf]
        %v470 = vunpack.c.l.b16 %v466
        %v471 = vunpack.c.l.b16 %v467
        %v472 = vpack.c.b16 %v471, %v470
        %473 = vrot.lane.b32.xlu0 %v472, 4
        %v474 = vpop.permute.xlu0 %473
        %478 = vrot.lane.b32.xlu0 %v474, 127
        %v479 = vpop.permute.xlu0 %478
        %481 = vrot.lane.b32.xlu0 %v474, 126
        %v482 = vpop.permute.xlu0 %481
        %484 = vrot.lane.b32.xlu0 %v474, 125
        %v485 = vpop.permute.xlu0 %484
        %487 = vrot.lane.b32.xlu0 %v474, 124
        %v488 = vpop.permute.xlu0 %487
        %490 = vrot.lane.b32.xlu0 %v474, 123
        %v491 = vpop.permute.xlu0 %490
        %493 = vrot.lane.b32.xlu0 %v474, 122
        %v494 = vpop.permute.xlu0 %493
        %496 = vrot.lane.b32.xlu0 %v474, 121
        %v497 = vpop.permute.xlu0 %496
        %499 = vrot.lane.b32.xlu0 %v474, 120
        %v500 = vpop.permute.xlu0 %499
        %502 = vmatprep.subr.bf16.mxu0 0
        %503 = vmatpush1.bf16.msra.mxu0 %v497
        %504 = vmatprep.subr.bf16.mxu0 0
        %505 = vmatpush1.bf16.msra.mxu0 %v494
        %506 = vmatprep.subr.bf16.mxu0 0
        %507 = vmatpush1.bf16.msra.mxu0 %v491
        %508 = vmatprep.subr.bf16.mxu0 0
        %509 = vmatpush1.bf16.msra.mxu0 %v488
        %510 = vmatprep.subr.bf16.mxu0 0
        %511 = vmatpush1.bf16.msra.mxu0 %v485
        %512 = vmatprep.subr.bf16.mxu0 0
        %513 = vmatpush1.bf16.msra.mxu0 %v482
        %514 = vmatprep.subr.bf16.mxu0 0
        %515 = vmatpush1.bf16.msra.mxu0 %v479
        %516 = vmatprep.subr.bf16.mxu0 0
        %517 = vmatpush1.bf16.msra.mxu0 %v474
        %518 = vmatprep.subr.bf16.mxu0 0
        %519 = vmatpush2.bf16.msra.mxu0 0
        %520 = vmatprep.subr.bf16.mxu0 0
        %521 = vmatpush2.bf16.msra.mxu0 0
        %522 = vmatprep.subr.bf16.mxu0 0
        %523 = vmatpush2.bf16.msra.mxu0 0
        %524 = vmatprep.subr.bf16.mxu0 0
        %525 = vmatpush2.bf16.msra.mxu0 0
        %526 = vmatprep.subr.bf16.mxu0 0
        %527 = vmatpush2.bf16.msra.mxu0 0
        %528 = vmatprep.subr.bf16.mxu0 0
        %529 = vmatpush2.bf16.msra.mxu0 0
        %530 = vmatprep.subr.bf16.mxu0 0
        %531 = vmatpush2.bf16.msra.mxu0 0
        %532 = vmatprep.subr.bf16.mxu0 0
        %533 = vmatpush2.bf16.msra.mxu0 %v500
        %534 = vmatprep.mubr.bf16.mxu0 %v258
        %535 = vmatmul.mubr.bf16.gmra.mxu0 %v253
        %v536 = vpop.f32.mrf.mxu0
        %v537 = vadd.f32 %v204, %v536
        %v538 = vpop.f32.mrf.mxu0
        %v539 = vpop.f32.mrf.mxu0
        %v540 = vadd.f32 %v209, %v539
        %v541 = vpop.f32.mrf.mxu0
        %542 = vdwg.mxu0
        %s543 = scalar_lea.vmem %s194, 48
        %544 = vst [vmem:[%s543] sm:$0xff] %v537
        %545 = vst [vmem:[%s543 + $0x8] sm:$0x3] %v540
        %s546 = smul.u32 4, %s17
        %p547 = scmp.lt.s32.totalorder %s546, 7
        %s548 = scalar_select %p547, %s546, 7
        %s549 = smul.addr %s548, 2
        %s550 = smul.addr %s549, 8
        %s551 = scalar_lea.vmem %s3, %s550
        // Predicated region
        $region37: #{tpu_custom_call.1} parent=31 // pred_check
          %p552 = pneg %p103
        $region38: #{tpu_custom_call.1} parent=31 // pred_check_branch
          %554 = sbr.rel (%p552) target = $region40
        $region39: #{tpu_custom_call.1} parent=31 // pred_region
          %s555 = smul.u32 4, %s17
        $region40: #{tpu_custom_call.1} parent=31 // pred_fallthru
          _
      $region32: #{tpu_custom_call.1} parent=5 // pred_fallthru
        _
      %p556 = scmp.le.s32.totalorder 2, %s12
      // Predicated region
      $region41: #{tpu_custom_call.1} parent=5 // pred_check
        %p557 = pneg %p556
      $region42: #{tpu_custom_call.1} parent=5 // pred_check_branch
        %559 = sbr.rel (%p557) target = $region44
      $region43: #{tpu_custom_call.1} parent=5 // pred_region
        %s560 = ssub.s32 %s12, 2
        // Predicated region
        $region45: #{tpu_custom_call.1} parent=43 // pred_check
          %p561 = pneg %p109
        $region46: #{tpu_custom_call.1} parent=43 // pred_check_branch
          %563 = sbr.rel (%p561) target = $region48
        $region47: #{tpu_custom_call.1} parent=43 // pred_region
          %s564 = smul.u32 4, %s18
          %p565 = scmp.lt.s32.totalorder %s564, 7
          %s566 = scalar_select %p565, %s564, 7
          %s567 = smul.addr %s566, 2
          %s568 = smul.addr %s567, 8
          %s569 = scalar_lea.vmem %s3, %s568
        $region48: #{tpu_custom_call.1} parent=43 // pred_fallthru
          _
      $region44: #{tpu_custom_call.1} parent=5 // pred_fallthru
        _
    $region6: #{tpu_custom_call.1} parent=1 // loop_footer
      %s16 = sadd.s32 1, %s12
    $region7: #{tpu_custom_call.1} parent=1 // loop_footer_branch
      %11 = sbr.rel target = $region3
    $region8: #{tpu_custom_call.1} parent=1 // loop_exit
      _
    %570 = vsyncpa [#allocation3], 1
    %s571 = scalar_lea.sflag [#allocation3], 1
    %572 = vsyncpa %s571, 1

</llo_original>
